<compile_context>
chip_gen: v7x
topology: tpu7x:2x2x1
jax: 0.10.0
libtpu: 0.0.40
codegen_flags: <defaults>
</compile_context>

<pallas_src>
import jax
import jax.numpy as jnp
from jax.experimental import pallas as pl
from jax.experimental.pallas import tpu as pltpu


def _round_up(a, m):
    return -(-a // m) * m


def _vmem_capacity_bytes():
    """Physical VMEM per core, with a generation-aware fallback."""
    try:
        return int(pltpu.get_tpu_info().vmem_capacity_bytes)
    except Exception:
        pass
    try:
        kind = jax.devices()[0].device_kind.lower()
        if any(t in kind for t in ("v4", "v5", "v6")):
            return 128 * 1024 * 1024
    except Exception:
        pass
    return 64 * 1024 * 1024          # v7x / unknown: be conservative


def _pick_bblk(B, footprint_fn, budget, grain=16, target_steps=8):
    """Largest column block (multiple of `grain`) whose *padded* VMEM footprint
    fits `budget`; when there is enough work, also aim for >= target_steps grid
    steps so each TensorCore keeps i+1 prefetch / i-1 writeback overlap."""
    bmax = _round_up(max(B, 1), grain)
    bblk = bmax
    while bblk > grain and footprint_fn(bblk) > budget:
        bblk = max(grain, _round_up(bblk // 2, grain))
    if bmax >= target_steps * grain:
        bblk = min(bblk, _round_up(-(-B // target_steps), grain))
    return max(bblk, grain)


def _banded_kernel(x_ref, w_ref, shift_ref, o_ref, acc_ref):
    # x_ref:     (D+2, BB, (H+2)*Cin)   bf16  (D halo in leading dim)
    # w_ref:     (3, (H+2)*Cin, H*Cout) bf16  block-banded, BN scale folded in
    # shift_ref: (1, H*Cout)            f32   beta + (bias - mean) * scale
    # o_ref:     (D, BB, H*Cout)
    # acc_ref:   (D*BB, H*Cout)         f32   scratch accumulator (in place)
    D, BB, HC = o_ref.shape
    KH = x_ref.shape[2]
    M = D * BB
    for kd in range(3):                       # unrolled: 3 MXU matmuls
        lhs = x_ref[kd:kd + D, :, :].reshape(M, KH)     # pure view
        contrib = jnp.dot(lhs, w_ref[kd], preferred_element_type=jnp.float32)
        if kd == 0:
            acc_ref[...] = contrib
        else:
            acc_ref[...] += contrib
    y = jnp.maximum(acc_ref[...] + shift_ref[...], 0.0)
    o_ref[...] = y.reshape(D, BB, HC).astype(o_ref.dtype)


def _taps_kernel(x_ref, w_ref, shift_ref, o_ref, acc_ref):
    # Large-channel fallback: 9 shifted matmuls with K = Cin.
    # x_ref:     (D+2, H+2, BB, Cin) bf16
    # w_ref:     (9, Cin, Cout)      bf16 (BN scale folded)
    # shift_ref: (1, Cout)           f32
    # o_ref:     (D, H, BB, Cout)
    # acc_ref:   (D*H*BB, Cout)      f32 scratch
    D, H, BB, Cout = o_ref.shape
    Cin = x_ref.shape[3]
    M = D * H * BB
    for kd in range(3):
        for kh in range(3):
            patch = x_ref[kd:kd + D, kh:kh + H, :, :].reshape(M, Cin)
            contrib = jnp.dot(patch, w_ref[kd * 3 + kh],
                              preferred_element_type=jnp.float32)
            if kd == 0 and kh == 0:
                acc_ref[...] = contrib
            else:
                acc_ref[...] += contrib
    y = jnp.maximum(acc_ref[...] + shift_ref[...], 0.0)
    o_ref[...] = y.reshape(D, H, BB, Cout).astype(o_ref.dtype)


def conv_3x3x1_forward(x, w, b, gamma, beta, running_mean, running_var,
                       eps=1e-5):
    """Fused Conv3d(k=(3,3,1), p=(1,1,0), bias) + BatchNorm3d(eval) + ReLU.

    x: (N, Cin, D, H, W) NCDHW (PyTorch layout).  Returns NCDHW with Cout
    channels, same dtype as x.
    """
    N, Cin, D, H, W = x.shape
    Cout = w.shape[0]
    B = N * W
    out_dt = x.dtype
    out_isz = jnp.dtype(out_dt).itemsize
    GRAIN = 16                                   # bf16 sublane packing
    LANE = 128

    # ---- fold conv bias + BN(eval) into weight scale / one per-channel shift.
    inv_std = 1.0 / jnp.sqrt(running_var.astype(jnp.float32) + eps)
    scale = gamma.astype(jnp.float32) * inv_std                       # (Cout,)
    shift = (beta.astype(jnp.float32)
             + (b.astype(jnp.float32) - running_mean.astype(jnp.float32))
             * scale)                                                 # (Cout,)
    # (Cout, Cin, 3, 3, 1) -> (kd, kh, Cin, Cout), BN scale folded in.
    wk = jnp.transpose(w[..., 0].astype(jnp.float32), (2, 3, 1, 0)) * scale

    cap = _vmem_capacity_bytes()
    budget = int(cap * 0.55)                     # padded-footprint budget
    vmem_limit = int(cap * 0.8)

    # bf16 BEFORE any layout pass: halves HBM traffic of the transpose/pad.
    xb = x.astype(jnp.bfloat16)

    Hp, KH, HC = H + 2, (H + 2) * Cin, H * Cout
    use_banded = (Cin <= 32) and (3 * KH * HC * 2 <= (4 << 20))

    if use_banded:
        # ---- layout: (N,Cin,D,H,W) -> (D,N,W,H,Cin) -> halo-pad D/H ->
        #      view as (D+2, B, (H+2)*Cin): B in sublanes, (H,Cin) in lanes.
        xt = jnp.transpose(xb, (2, 0, 4, 3, 1))
        xt = jnp.pad(xt, ((1, 1), (0, 0), (0, 0), (1, 1), (0, 0)))
        xt = xt.reshape(D + 2, B, KH)            # row-major => free view

        # ---- block-banded weights:
        # Wb[kd][h_in*Cin + c, h_out*Cout + o] = wk[kd, h_in-h_out, c, o]
        # when 0 <= h_in - h_out <= 2, else 0.
        eyes = jnp.stack([jnp.eye(Hp, H, k=-kh, dtype=jnp.float32)
                          for kh in range(3)])                        # (3,Hp,H)
        wband = jnp.einsum("xpq,dxco->dpcqo", eyes, wk)
        wband = wband.reshape(3, KH, HC).astype(jnp.bfloat16)
        shift_t = jnp.tile(shift, H).reshape(1, HC)                   # f32

        def footprint(bblk):      # padded (lane=128 / sublane) VMEM bytes
            in_t = (D + 2) * _round_up(bblk, 16) * _round_up(KH, LANE) * 2
            out_t = D * _round_up(bblk, 8) * _round_up(HC, LANE) * out_isz
            acc = _round_up(D * bblk, 8) * _round_up(HC, LANE) * 4
            wgt = 3 * _round_up(KH, 16) * _round_up(HC, LANE) * 2
            sft = 8 * _round_up(HC, LANE) * 4
            # in/out/weights/shift double-buffered by the pipeline (constant
            # index_map blocks are not re-DMA'd but still hold 2 buffers);
            # scratch is single, plus ~1 acc-sized matmul temporary.
            return 2 * (in_t + out_t + wgt + sft) + 2 * acc

        bblk = _pick_bblk(B, footprint, budget, grain=GRAIN)
        Bp = _round_up(B, bblk)
        if Bp > B:
            xt = jnp.pad(xt, ((0, 0), (0, Bp - B), (0, 0)))
        grid = (Bp // bblk,)

        flops = 2 * 3 * (D * Bp) * KH * HC
        bytes_accessed = (xt.size * 2 + wband.size * 2 + shift_t.size * 4
                          + D * Bp * HC * out_isz)

        out = pl.pallas_call(
            _banded_kernel,
            out_shape=jax.ShapeDtypeStruct((D, Bp, HC), out_dt),
            grid=grid,
            in_specs=[
                pl.BlockSpec((D + 2, bblk, KH), lambda i: (0, i, 0)),
                pl.BlockSpec((3, KH, HC), lambda i: (0, 0, 0)),
                pl.BlockSpec((1, HC), lambda i: (0, 0)),
            ],
            out_specs=pl.BlockSpec((D, bblk, HC), lambda i: (0, i, 0)),
            scratch_shapes=[pltpu.VMEM((D * bblk, HC), jnp.float32)],
            compiler_params=pltpu.CompilerParams(
                dimension_semantics=("parallel",),
                vmem_limit_bytes=vmem_limit),
            cost_estimate=pl.CostEstimate(flops=flops, transcendentals=0,
                                          bytes_accessed=bytes_accessed),
        )(xt, wband, shift_t)

        out = out[:, :B, :].reshape(D, N, W, H, Cout)
        return jnp.transpose(out, (1, 4, 0, 3, 2))       # -> (N,Cout,D,H,W)

    # ---- large-channel fallback: 9 shifted matmuls with K = Cin.
    wk9 = wk.reshape(9, Cin, Cout).astype(jnp.bfloat16)
    shift2 = shift.reshape(1, Cout)
    xt = jnp.transpose(xb, (2, 3, 0, 4, 1))              # (D, H, N, W, Cin)
    xt = jnp.pad(xt, ((1, 1), (1, 1), (0, 0), (0, 0), (0, 0)))
    xt = xt.reshape(D + 2, H + 2, B, Cin)

    def footprint(bblk):
        in_t = ((D + 2) * (H + 2) * _round_up(bblk, 16)
                * _round_up(Cin, LANE) * 2)
        out_t = D * H * _round_up(bblk, 8) * _round_up(Cout, LANE) * out_isz
        acc = _round_up(D * H * bblk, 8) * _round_up(Cout, LANE) * 4
        wgt = 9 * _round_up(Cin, 16) * _round_up(Cout, LANE) * 2
        sft = 8 * _round_up(Cout, LANE) * 4
        return 2 * (in_t + out_t + wgt + sft) + 2 * acc

    bblk = _pick_bblk(B, footprint, budget, grain=GRAIN)
    Bp = _round_up(B, bblk)
    if Bp > B:
        xt = jnp.pad(xt, ((0, 0), (0, 0), (0, Bp - B), (0, 0)))
    grid = (Bp // bblk,)

    flops = 2 * 9 * (D * H * Bp) * Cin * Cout
    bytes_accessed = (xt.size * 2 + wk9.size * 2 + shift2.size * 4
                      + D * H * Bp * Cout * out_isz)

    out = pl.pallas_call(
        _taps_kernel,
        out_shape=jax.ShapeDtypeStruct((D, H, Bp, Cout), out_dt),
        grid=grid,
        in_specs=[
            pl.BlockSpec((D + 2, H + 2, bblk, Cin), lambda i: (0, 0, i, 0)),
            pl.BlockSpec((9, Cin, Cout), lambda i: (0, 0, 0)),
            pl.BlockSpec((1, Cout), lambda i: (0, 0)),
        ],
        out_specs=pl.BlockSpec((D, H, bblk, Cout), lambda i: (0, 0, i, 0)),
        scratch_shapes=[pltpu.VMEM((D * H * bblk, Cout), jnp.float32)],
        compiler_params=pltpu.CompilerParams(
            dimension_semantics=("parallel",),
            vmem_limit_bytes=vmem_limit),
        cost_estimate=pl.CostEstimate(flops=flops, transcendentals=0,
                                      bytes_accessed=bytes_accessed),
    )(xt, wk9, shift2)

    out = out[:, :, :B, :].reshape(D, H, N, W, Cout)
    return jnp.transpose(out, (2, 4, 0, 1, 3))           # -> (N,Cout,D,H,W)


def _reference(x, w, b, gamma, beta, running_mean, running_var, eps=1e-5):
    """Pure-JAX reference: Conv3d(3,3,1) + BatchNorm3d(eval) + ReLU."""
    y = jax.lax.conv_general_dilated(
        x, w, window_strides=(1, 1, 1),
        padding=((1, 1), (1, 1), (0, 0)),
        dimension_numbers=("NCDHW", "OIDHW", "NCDHW"))
    y = y + b.reshape(1, -1, 1, 1, 1)
    inv_std = 1.0 / jnp.sqrt(running_var + eps)
    y = ((y - running_mean.reshape(1, -1, 1, 1, 1))
         * (gamma * inv_std).reshape(1, -1, 1, 1, 1)
         + beta.reshape(1, -1, 1, 1, 1))
    return jnp.maximum(y, 0.0)


if __name__ == "__main__":
    # Small shapes consistent with the module (NCDHW).
    N, Cin, Cout, D, H, W = 2, 4, 8, 8, 8, 4

    key = jax.random.PRNGKey(0)
    kx, kw, kb, kg, kbe, km, kv = jax.random.split(key, 7)
    x = jax.random.normal(kx, (N, Cin, D, H, W), jnp.float32)
    w = jax.random.normal(kw, (Cout, Cin, 3, 3, 1), jnp.float32) * 0.1
    b = jax.random.normal(kb, (Cout,), jnp.float32) * 0.1
    gamma = 1.0 + 0.1 * jax.random.normal(kg, (Cout,), jnp.float32)
    beta = 0.1 * jax.random.normal(kbe, (Cout,), jnp.float32)
    running_mean = 0.1 * jax.random.normal(km, (Cout,), jnp.float32)
    running_var = jnp.abs(1.0 + 0.1 * jax.random.normal(kv, (Cout,), jnp.float32))

    fwd = jax.jit(conv_3x3x1_forward)
    out = jax.block_until_ready(fwd(x, w, b, gamma, beta,
                                    running_mean, running_var))

    ref = _reference(x, w, b, gamma, beta, running_mean, running_var)
    assert out.shape == (N, Cout, D, H, W), out.shape
    max_err = float(jnp.max(jnp.abs(out - ref)))
    # bf16 matmul inputs with f32 accumulation -> relaxed tolerance.
    assert jnp.allclose(out, ref, rtol=3e-2, atol=3e-2), max_err

    print("KERNEL_OK")
</pallas_src>

<mosaic_0001>
module attributes {stable_mosaic.version = 11 : i64} {
  func.func @_banded_kernel(%arg0: i32, %arg1: memref<10x16x40xbf16, #tpu.memory_space<vmem>>, %arg2: memref<3x40x64xbf16, #tpu.memory_space<vmem>>, %arg3: memref<1x64xf32, #tpu.memory_space<vmem>>, %arg4: memref<8x16x64xf32, #tpu.memory_space<vmem>>, %arg5: memref<128x64xf32, #tpu.memory_space<vmem>>) attributes {dimension_semantics = [#tpu.dimension_semantics<parallel>], iteration_bounds = array<i64: 1>, scalar_prefetch = 0 : i64, scratch_operands = 1 : i64, tpu.core_type = #tpu.core_type<tc>, window_params = [{transform_indices = @transform_0, window_bounds = array<i64: 10, 16, 40>}, {pipeline_mode = #tpu.pipeline_mode<synchronous>, transform_indices = @transform_1, window_bounds = array<i64: 3, 40, 64>}, {pipeline_mode = #tpu.pipeline_mode<synchronous>, transform_indices = @transform_2, window_bounds = array<i64: 1, 64>}, {transform_indices = @transform_3, window_bounds = array<i64: 8, 16, 64>}]} {
    %c0 = arith.constant 0 : index
    %c0_0 = arith.constant 0 : index
    %c0_1 = arith.constant 0 : index
    %0 = vector.load %arg1[%c0, %c0_0, %c0_1] : memref<10x16x40xbf16, #tpu.memory_space<vmem>>, vector<8x16x40xbf16>
    %1 = vector.shape_cast %0 : vector<8x16x40xbf16> to vector<128x40xbf16>
    %c0_2 = arith.constant 0 : index
    %c0_3 = arith.constant 0 : index
    %c0_4 = arith.constant 0 : index
    %2 = vector.load %arg2[%c0_2, %c0_3, %c0_4] : memref<3x40x64xbf16, #tpu.memory_space<vmem>>, vector<1x40x64xbf16>
    %3 = vector.shape_cast %2 : vector<1x40x64xbf16> to vector<40x64xbf16>
    %cst = arith.constant dense<0.000000e+00> : vector<128x64xf32>
    %4 = tpu.matmul %1, %3, %cst {dimension_numbers = #tpu.dot_dimension_numbers<[1], [0], [0], [1], [0, 0, 1, 1], [], []>} : vector<128x40xbf16>, vector<40x64xbf16>, vector<128x64xf32> -> vector<128x64xf32>
    %c0_5 = arith.constant 0 : index
    %c0_6 = arith.constant 0 : index
    %5 = vector.load %arg5[%c0_5, %c0_6] : memref<128x64xf32, #tpu.memory_space<vmem>>, vector<128x64xf32>
    tpu.vector_store %arg5[%c0_5, %c0_6], %4 {strides = array<i32>} : memref<128x64xf32, #tpu.memory_space<vmem>>, vector<128x64xf32>,
    %c1 = arith.constant 1 : index
    %c0_7 = arith.constant 0 : index
    %c0_8 = arith.constant 0 : index
    %6 = vector.load %arg1[%c1, %c0_7, %c0_8] : memref<10x16x40xbf16, #tpu.memory_space<vmem>>, vector<8x16x40xbf16>
    %7 = vector.shape_cast %6 : vector<8x16x40xbf16> to vector<128x40xbf16>
    %c1_9 = arith.constant 1 : index
    %c0_10 = arith.constant 0 : index
    %c0_11 = arith.constant 0 : index
    %8 = vector.load %arg2[%c1_9, %c0_10, %c0_11] : memref<3x40x64xbf16, #tpu.memory_space<vmem>>, vector<1x40x64xbf16>
    %9 = vector.shape_cast %8 : vector<1x40x64xbf16> to vector<40x64xbf16>
    %cst_12 = arith.constant dense<0.000000e+00> : vector<128x64xf32>
    %10 = tpu.matmul %7, %9, %cst_12 {dimension_numbers = #tpu.dot_dimension_numbers<[1], [0], [0], [1], [0, 0, 1, 1], [], []>} : vector<128x40xbf16>, vector<40x64xbf16>, vector<128x64xf32> -> vector<128x64xf32>
    %c0_13 = arith.constant 0 : index
    %c0_14 = arith.constant 0 : index
    %11 = vector.load %arg5[%c0_13, %c0_14] : memref<128x64xf32, #tpu.memory_space<vmem>>, vector<128x64xf32>
    %12 = arith.addf %11, %10 : vector<128x64xf32>
    %c0_15 = arith.constant 0 : index
    %c0_16 = arith.constant 0 : index
    %13 = vector.load %arg5[%c0_15, %c0_16] : memref<128x64xf32, #tpu.memory_space<vmem>>, vector<128x64xf32>
    tpu.vector_store %arg5[%c0_15, %c0_16], %12 {strides = array<i32>} : memref<128x64xf32, #tpu.memory_space<vmem>>, vector<128x64xf32>,
    %c2 = arith.constant 2 : index
    %c0_17 = arith.constant 0 : index
    %c0_18 = arith.constant 0 : index
    %14 = vector.load %arg1[%c2, %c0_17, %c0_18] : memref<10x16x40xbf16, #tpu.memory_space<vmem>>, vector<8x16x40xbf16>
    %15 = vector.shape_cast %14 : vector<8x16x40xbf16> to vector<128x40xbf16>
    %c2_19 = arith.constant 2 : index
    %c0_20 = arith.constant 0 : index
    %c0_21 = arith.constant 0 : index
    %16 = vector.load %arg2[%c2_19, %c0_20, %c0_21] : memref<3x40x64xbf16, #tpu.memory_space<vmem>>, vector<1x40x64xbf16>
    %17 = vector.shape_cast %16 : vector<1x40x64xbf16> to vector<40x64xbf16>
    %cst_22 = arith.constant dense<0.000000e+00> : vector<128x64xf32>
    %18 = tpu.matmul %15, %17, %cst_22 {dimension_numbers = #tpu.dot_dimension_numbers<[1], [0], [0], [1], [0, 0, 1, 1], [], []>} : vector<128x40xbf16>, vector<40x64xbf16>, vector<128x64xf32> -> vector<128x64xf32>
    %c0_23 = arith.constant 0 : index
    %c0_24 = arith.constant 0 : index
    %19 = vector.load %arg5[%c0_23, %c0_24] : memref<128x64xf32, #tpu.memory_space<vmem>>, vector<128x64xf32>
    %20 = arith.addf %19, %18 : vector<128x64xf32>
    %c0_25 = arith.constant 0 : index
    %c0_26 = arith.constant 0 : index
    %21 = vector.load %arg5[%c0_25, %c0_26] : memref<128x64xf32, #tpu.memory_space<vmem>>, vector<128x64xf32>
    tpu.vector_store %arg5[%c0_25, %c0_26], %20 {strides = array<i32>} : memref<128x64xf32, #tpu.memory_space<vmem>>, vector<128x64xf32>,
    %c0_27 = arith.constant 0 : index
    %c0_28 = arith.constant 0 : index
    %22 = vector.load %arg5[%c0_27, %c0_28] : memref<128x64xf32, #tpu.memory_space<vmem>>, vector<128x64xf32>
    %c0_29 = arith.constant 0 : index
    %c0_30 = arith.constant 0 : index
    %23 = vector.load %arg3[%c0_29, %c0_30] : memref<1x64xf32, #tpu.memory_space<vmem>>, vector<1x64xf32>
    %24 = vector.broadcast %23 : vector<1x64xf32> to vector<128x64xf32>
    %25 = arith.addf %22, %24 : vector<128x64xf32>
    %cst_31 = arith.constant 0.000000e+00 : f32
    %26 = vector.broadcast %cst_31 : f32 to vector<128x64xf32>
    %27 = arith.maximumf %25, %26 : vector<128x64xf32>
    %28 = vector.shape_cast %27 : vector<128x64xf32> to vector<8x16x64xf32>
    %c0_32 = arith.constant 0 : index
    %c0_33 = arith.constant 0 : index
    %c0_34 = arith.constant 0 : index
    %29 = vector.load %arg4[%c0_32, %c0_33, %c0_34] : memref<8x16x64xf32, #tpu.memory_space<vmem>>, vector<8x16x64xf32>
    tpu.vector_store %arg4[%c0_32, %c0_33, %c0_34], %28 {strides = array<i32>} : memref<8x16x64xf32, #tpu.memory_space<vmem>>, vector<8x16x64xf32>,
    return
  }
  func.func @transform_0(%arg0: i32) -> (i32, i32, i32) {
    %c0_i32 = arith.constant 0 : i32
    %c0_i32_0 = arith.constant 0 : i32
    %c0_i32_1 = arith.constant 0 : i32
    return %c0_i32, %arg0, %c0_i32_0 : i32, i32, i32
  }
  func.func @transform_1(%arg0: i32) -> (i32, i32, i32) {
    %c0_i32 = arith.constant 0 : i32
    %c0_i32_0 = arith.constant 0 : i32
    %c0_i32_1 = arith.constant 0 : i32
    %c0_i32_2 = arith.constant 0 : i32
    return %c0_i32, %c0_i32_0, %c0_i32_1 : i32, i32, i32
  }
  func.func @transform_2(%arg0: i32) -> (i32, i32) {
    %c0_i32 = arith.constant 0 : i32
    %c0_i32_0 = arith.constant 0 : i32
    %c0_i32_1 = arith.constant 0 : i32
    return %c0_i32, %c0_i32_0 : i32, i32
  }
  func.func @transform_3(%arg0: i32) -> (i32, i32, i32) {
    %c0_i32 = arith.constant 0 : i32
    %c0_i32_0 = arith.constant 0 : i32
    %c0_i32_1 = arith.constant 0 : i32
    return %c0_i32, %arg0, %c0_i32_0 : i32, i32, i32
  }
}

</mosaic_0001>

<llo_original>
// kernel: tile.8
$region0: #{tile.8}
  #allocation0 [shape = 's32[1]{0}', space=sflag, size = 0x4, scoped, tag = 'scoped memory for tile.8']
  %s0 = inlined_call_operand.vmem [shape: f32[8], index: 0, kind: input, shape index: {}]
  %s1 = inlined_call_operand.vmem [shape: f32[8,8], index: 1, kind: output, shape index: {}]
  // Predicated region
  $region2: #{tile.8} parent=0 // pred_check
    _
  $region3: #{tile.8} parent=0 // pred_check_branch
    %3 = sbr.rel (0) target = $region5
  $region4: #{tile.8} parent=0 // pred_region
    _
  $region5: #{tile.8} parent=0 // pred_fallthru
    _
  %v4 = vld [vmem:[%s0] ss:$0 sm:$0xff]
  %5 = vst [vmem:[%s1] sm:$0xff] %v4

// kernel: tile.9
$region0: #{tile.9}
  %s0 = inlined_call_operand.vmem [shape: f32[8,8], index: 0, kind: input, shape index: {}]
  %s1 = inlined_call_operand.vmem [shape: f32[1,64], index: 1, kind: output, shape index: {}]
  $region1: #{tile.9} parent=0
    #allocation0 [shape = 'u8[4096]{0}', space=vmem, size = 0x1000, scoped, tag = 'scoped mem for output reshape']
    %v2 = vld [vmem:[%s0] sm:$0x1]
    %vm3 = vcmask 64512
    %4 = vst.msk [vmem:[#allocation0] sm:$0x1] %vm3, %v2
    %s5 = scalar_lea.vmem %s0, 7
    %v6 = vld [vmem:[%s5] sm:$0x1]
    %7 = vrot.lane.b32.xlu0 %v6, 56
    %v8 = vpop.permute.xlu0 %7
    %vm9 = vcmask 523712
    %10 = vst.msk [vmem:[#allocation0] sm:$0x1] %vm9, %v8
    %s11 = scalar_lea.vmem %s0, 6
    %v12 = vld [vmem:[%s11] sm:$0x1]
    %13 = vrot.lane.b32.xlu0 %v12, 48
    %v14 = vpop.permute.xlu0 %13
    %vm15 = vcmask 458112
    %16 = vst.msk [vmem:[#allocation0] sm:$0x1] %vm15, %v14
    %s17 = scalar_lea.vmem %s0, 5
    %v18 = vld [vmem:[%s17] sm:$0x1]
    %19 = vrot.lane.b32.xlu0 %v18, 40
    %v20 = vpop.permute.xlu0 %19
    %vm21 = vcmask 392512
    %22 = vst.msk [vmem:[#allocation0] sm:$0x1] %vm21, %v20
    %s23 = scalar_lea.vmem %s0, 4
    %v24 = vld [vmem:[%s23] sm:$0x1]
    %25 = vrot.lane.b32.xlu0 %v24, 32
    %v26 = vpop.permute.xlu0 %25
    %vm27 = vcmask 326912
    %28 = vst.msk [vmem:[#allocation0] sm:$0x1] %vm27, %v26
    %s29 = scalar_lea.vmem %s0, 3
    %v30 = vld [vmem:[%s29] sm:$0x1]
    %31 = vrot.lane.b32.xlu0 %v30, 24
    %v32 = vpop.permute.xlu0 %31
    %vm33 = vcmask 261312
    %34 = vst.msk [vmem:[#allocation0] sm:$0x1] %vm33, %v32
    %s35 = scalar_lea.vmem %s0, 2
    %v36 = vld [vmem:[%s35] sm:$0x1]
    %37 = vrot.lane.b32.xlu0 %v36, 16
    %v38 = vpop.permute.xlu0 %37
    %vm39 = vcmask 195712
    %40 = vst.msk [vmem:[#allocation0] sm:$0x1] %vm39, %v38
    %s41 = scalar_lea.vmem %s0, 1
    %v42 = vld [vmem:[%s41] sm:$0x1]
    %43 = vrot.lane.b32.xlu0 %v42, 8
    %v44 = vpop.permute.xlu0 %43
    %vm45 = vcmask 130112
    %46 = vst.msk [vmem:[#allocation0] sm:$0x1] %vm45, %v44
    %s48 = sshllo.u32 0, 1
    %v50 = vld [vmem:[#allocation0] sm:%s48]
    %s51 = sshllo.u32 0, 1
    %52 = vst [vmem:[%s1] sm:%s51] %v50

// kernel: conv_3x3x1_forward.1
$region0: #{conv_3x3x1_forward.1}
  #allocation0 [shape = 'u32[]', space=smem, size = 0x4, offset = 0x4, fixed_abs, tag = 'smem constant byte address 0x4 - core index']
  #allocation1 [shape = 'u32[144,128]{1,0:T(1,128)}', space=vmem, size = 0x12000, scoped, tag = 'internal scratch']
  #allocation2 [shape = 'f32[128,64]{1,0:T(8,128)}', space=vmem, size = 0x10000, scoped, tag = 'scratch operand']
  %s0 = inlined_call_operand.vmem [shape: bf16[10,16,40], index: 0, kind: input, shape index: {}]
  %s1 = inlined_call_operand.vmem [shape: bf16[3,40,64], index: 1, kind: input, shape index: {}]
  %s2 = inlined_call_operand.vmem [shape: f32[1,64], index: 2, kind: input, shape index: {}]
  %s3 = inlined_call_operand.vmem [shape: f32[8,16,64], index: 3, kind: output, shape index: {}]
  %s4 = sld [smem:[#allocation0]]
  $region22: #{conv_3x3x1_forward.1} parent=0
    _
  %s6 = ssub.s32 1, %s4
  %s7 = scalar_select 0, %s6, %s4
  // Predicated region
  $region2: #{conv_3x3x1_forward.1} parent=0 // pred_check
    _
  $region3: #{conv_3x3x1_forward.1} parent=0 // pred_check_branch
    %9 = sbr.rel (0) target = $region5
  $region4: #{conv_3x3x1_forward.1} parent=0 // pred_region
    _
  $region5: #{conv_3x3x1_forward.1} parent=0 // pred_fallthru
    _
  // Predicated region
  $region6: #{conv_3x3x1_forward.1} parent=0 // pred_check
    _
  $region7: #{conv_3x3x1_forward.1} parent=0 // pred_check_branch
    %11 = sbr.rel (0) target = $region9
  $region8: #{conv_3x3x1_forward.1} parent=0 // pred_region
    _
  $region9: #{conv_3x3x1_forward.1} parent=0 // pred_fallthru
    _
  // Predicated region
  $region10: #{conv_3x3x1_forward.1} parent=0 // pred_check
    _
  $region11: #{conv_3x3x1_forward.1} parent=0 // pred_check_branch
    %13 = sbr.rel (0) target = $region13
  $region12: #{conv_3x3x1_forward.1} parent=0 // pred_region
    _
  $region13: #{conv_3x3x1_forward.1} parent=0 // pred_fallthru
    _
  %v15 = vld [vmem:[%s0] sm:$0xf]
  %v16 = vld [vmem:[%s0 + $0x4] sm:$0xf]
  %v17 = vld [vmem:[%s0 + $0x8] sm:$0xf]
  %v18 = vld [vmem:[%s0 + $0xc] sm:$0xf]
  %v19 = vld [vmem:[%s0 + $0x10] sm:$0xf]
  %v20 = vld [vmem:[%s0 + $0x14] sm:$0xf]
  %v21 = vld [vmem:[%s0 + $0x18] sm:$0xf]
  %v22 = vld [vmem:[%s0 + $0x1c] sm:$0xf]
  %v23 = vld [vmem:[%s0 + $0x20] sm:$0xf]
  %v24 = vld [vmem:[%s0 + $0x24] sm:$0xf]
  %v25 = vld [vmem:[%s0 + $0x28] sm:$0xf]
  %v26 = vld [vmem:[%s0 + $0x2c] sm:$0xf]
  %v27 = vld [vmem:[%s0 + $0x30] sm:$0xf]
  %v28 = vld [vmem:[%s0 + $0x34] sm:$0xf]
  %v29 = vld [vmem:[%s0 + $0x38] sm:$0xf]
  %v30 = vld [vmem:[%s0 + $0x3c] sm:$0xf]
  %v31 = vld [vmem:[%s1] sm:$0xf]
  %v32 = vld [vmem:[%s1 + $0x4] sm:$0xf]
  %v33 = vld [vmem:[%s1 + $0x8] sm:$0xf]
  %v34 = vld [vmem:[%s1 + $0xc] sm:$0xf]
  %v35 = vld [vmem:[%s1 + $0x10] sm:$0xf]
  %v52 = vunpack.c.l.b16 %v15
  %v53 = vunpack.c.l.b16 %v16
  %v54 = vunpack.c.l.b16 %v17
  %v55 = vunpack.c.l.b16 %v18
  %v56 = vunpack.c.l.b16 %v19
  %v57 = vunpack.c.l.b16 %v20
  %v58 = vunpack.c.l.b16 %v21
  %v59 = vunpack.c.l.b16 %v22
  %v60 = vunpack.c.l.b16 %v23
  %v61 = vunpack.c.l.b16 %v24
  %v62 = vunpack.c.l.b16 %v25
  %v63 = vunpack.c.l.b16 %v26
  %v64 = vunpack.c.l.b16 %v27
  %v65 = vunpack.c.l.b16 %v28
  %v66 = vunpack.c.l.b16 %v29
  %v67 = vunpack.c.l.b16 %v30
  %v68 = vpack.c.b16 %v53, %v52
  %v69 = vpack.c.b16 %v55, %v54
  %v70 = vpack.c.b16 %v57, %v56
  %v71 = vpack.c.b16 %v59, %v58
  %v72 = vpack.c.b16 %v61, %v60
  %v73 = vpack.c.b16 %v63, %v62
  %v74 = vpack.c.b16 %v65, %v64
  %v75 = vpack.c.b16 %v67, %v66
  %v81 = vunpack.c.l.b16 %v31
  %v82 = vunpack.c.l.b16 %v32
  %v83 = vunpack.c.l.b16 %v33
  %v84 = vunpack.c.l.b16 %v34
  %v85 = vunpack.c.l.b16 %v35
  %v86 = vpack.c.b16 %v82, %v81
  %v87 = vpack.c.b16 %v84, %v83
  %v88 = vpack.c.b16 %v85, %v85
  %vm91 = vcmask 326656
  %v93 = vsel %vm91, %v68, 0
  %v96 = vsel %vm91, %v69, 0
  %v99 = vsel %vm91, %v70, 0
  %v102 = vsel %vm91, %v71, 0
  %v105 = vsel %vm91, %v72, 0
  %v108 = vsel %vm91, %v73, 0
  %v111 = vsel %vm91, %v74, 0
  %v114 = vsel %vm91, %v75, 0
  %vm116 = vcmask 1043456
  %v118 = vsel %vm116, %v88, 0
  %120 = vmatprep.subr.bf16.mxu0 0
  %121 = vmatpush1.bf16.msra.mxu0 %v86
  %122 = vmatprep.subr.bf16.mxu0 0
  %123 = vmatpush1.bf16.msra.mxu0 %v87
  %124 = vmatprep.subr.bf16.mxu0 0
  %125 = vmatpush1.bf16.msra.mxu0 %v118
  %126 = vmatprep.subr.bf16.mxu0 0
  %127 = vmatpush1.bf16.msra.mxu0 0
  %128 = vmatprep.subr.bf16.mxu0 0
  %129 = vmatpush1.bf16.msra.mxu0 0
  %130 = vmatprep.subr.bf16.mxu0 0
  %131 = vmatpush1.bf16.msra.mxu0 0
  %132 = vmatprep.subr.bf16.mxu0 0
  %133 = vmatpush1.bf16.msra.mxu0 0
  %134 = vmatprep.subr.bf16.mxu0 0
  %135 = vmatpush1.bf16.msra.mxu0 0
  %136 = vmatprep.subr.bf16.mxu0 0
  %137 = vmatpush1.bf16.msra.mxu0 0
  %138 = vmatprep.subr.bf16.mxu0 0
  %139 = vmatpush1.bf16.msra.mxu0 0
  %140 = vmatprep.subr.bf16.mxu0 0
  %141 = vmatpush1.bf16.msra.mxu0 0
  %142 = vmatprep.subr.bf16.mxu0 0
  %143 = vmatpush1.bf16.msra.mxu0 0
  %144 = vmatprep.subr.bf16.mxu0 0
  %145 = vmatpush1.bf16.msra.mxu0 0
  %146 = vmatprep.subr.bf16.mxu0 0
  %147 = vmatpush1.bf16.msra.mxu0 0
  %148 = vmatprep.subr.bf16.mxu0 0
  %149 = vmatpush1.bf16.msra.mxu0 0
  %150 = vmatprep.subr.bf16.mxu0 0
  %151 = vmatpush1.bf16.msra.mxu0 0
  %152 = vmatprep.mubr.bf16.mxu0 0
  %153 = vmatmul.mubr.bf16.gmra.mrb[0].mxu0 %v93
  %v154 = vpop.f32.mrb[0].mxu0
  %v155 = vadd.f32 0.0, %v154
  %v156 = vpop.f32.mrb[0].mxu0
  %v157 = vpop.f32.mrb[0].mxu0
  %v158 = vadd.f32 0.0, %v157
  %v159 = vpop.f32.mrb[0].mxu0
  %160 = vmatprep.mubr.bf16.mxu0 0
  %161 = vmatmul.mubr.bf16.gmra.mrb[0].mxu0 %v96
  %v162 = vpop.f32.mrb[0].mxu0
  %v163 = vadd.f32 0.0, %v162
  %v164 = vpop.f32.mrb[0].mxu0
  %v165 = vpop.f32.mrb[0].mxu0
  %v166 = vadd.f32 0.0, %v165
  %v167 = vpop.f32.mrb[0].mxu0
  %168 = vmatprep.mubr.bf16.mxu0 0
  %169 = vmatmul.mubr.bf16.gmra.mrb[0].mxu0 %v99
  %v170 = vpop.f32.mrb[0].mxu0
  %v171 = vadd.f32 0.0, %v170
  %v172 = vpop.f32.mrb[0].mxu0
  %v173 = vpop.f32.mrb[0].mxu0
  %v174 = vadd.f32 0.0, %v173
  %v175 = vpop.f32.mrb[0].mxu0
  %176 = vmatprep.mubr.bf16.mxu0 0
  %177 = vmatmul.mubr.bf16.gmra.mrb[0].mxu0 %v102
  %v178 = vpop.f32.mrb[0].mxu0
  %v179 = vadd.f32 0.0, %v178
  %v180 = vpop.f32.mrb[0].mxu0
  %v181 = vpop.f32.mrb[0].mxu0
  %v182 = vadd.f32 0.0, %v181
  %v183 = vpop.f32.mrb[0].mxu0
  %184 = vmatprep.mubr.bf16.mxu0 0
  %185 = vmatmul.mubr.bf16.gmra.mrb[0].mxu0 %v105
  %v186 = vpop.f32.mrb[0].mxu0
  %v187 = vadd.f32 0.0, %v186
  %v188 = vpop.f32.mrb[0].mxu0
  %v189 = vpop.f32.mrb[0].mxu0
  %v190 = vadd.f32 0.0, %v189
  %v191 = vpop.f32.mrb[0].mxu0
  %192 = vmatprep.mubr.bf16.mxu0 0
  %193 = vmatmul.mubr.bf16.gmra.mrb[0].mxu0 %v108
  %v194 = vpop.f32.mrb[0].mxu0
  %v195 = vadd.f32 0.0, %v194
  %v196 = vpop.f32.mrb[0].mxu0
  %v197 = vpop.f32.mrb[0].mxu0
  %v198 = vadd.f32 0.0, %v197
  %v199 = vpop.f32.mrb[0].mxu0
  %200 = vmatprep.mubr.bf16.mxu0 0
  %201 = vmatmul.mubr.bf16.gmra.mrb[0].mxu0 %v111
  %v202 = vpop.f32.mrb[0].mxu0
  %v203 = vadd.f32 0.0, %v202
  %v204 = vpop.f32.mrb[0].mxu0
  %v205 = vpop.f32.mrb[0].mxu0
  %v206 = vadd.f32 0.0, %v205
  %v207 = vpop.f32.mrb[0].mxu0
  %208 = vmatprep.mubr.bf16.mxu0 0
  %209 = vmatmul.mubr.bf16.gmra.mrb[0].mxu0 %v114
  %v210 = vpop.f32.mrb[0].mxu0
  %v211 = vadd.f32 0.0, %v210
  %v212 = vpop.f32.mrb[0].mxu0
  %v213 = vpop.f32.mrb[0].mxu0
  %v214 = vadd.f32 0.0, %v213
  %v215 = vpop.f32.mrb[0].mxu0
  %216 = vdwg.mxu0
  %vm217 = vcmask 523264
  %218 = vst.msk [vmem:[#allocation2] sm:$0xff] %vm217, %v155
  %219 = vst.msk [vmem:[#allocation2 + $0x8] sm:$0xff] %vm217, %v158
  %220 = vst.msk [vmem:[#allocation2 + $0x10] sm:$0xff] %vm217, %v163
  %221 = vst.msk [vmem:[#allocation2 + $0x18] sm:$0xff] %vm217, %v166
  %222 = vst.msk [vmem:[#allocation2 + $0x20] sm:$0xff] %vm217, %v171
  %223 = vst.msk [vmem:[#allocation2 + $0x28] sm:$0xff] %vm217, %v174
  %224 = vst.msk [vmem:[#allocation2 + $0x30] sm:$0xff] %vm217, %v179
  %225 = vst.msk [vmem:[#allocation2 + $0x38] sm:$0xff] %vm217, %v182
  %226 = vst.msk [vmem:[#allocation2 + $0x40] sm:$0xff] %vm217, %v187
  %227 = vst.msk [vmem:[#allocation2 + $0x48] sm:$0xff] %vm217, %v190
  %228 = vst.msk [vmem:[#allocation2 + $0x50] sm:$0xff] %vm217, %v195
  %229 = vst.msk [vmem:[#allocation2 + $0x58] sm:$0xff] %vm217, %v198
  %230 = vst.msk [vmem:[#allocation2 + $0x60] sm:$0xff] %vm217, %v203
  %231 = vst.msk [vmem:[#allocation2 + $0x68] sm:$0xff] %vm217, %v206
  %232 = vst.msk [vmem:[#allocation2 + $0x70] sm:$0xff] %vm217, %v211
  %233 = vst.msk [vmem:[#allocation2 + $0x78] sm:$0xff] %vm217, %v214
  %s234 = scalar_lea.vmem %s0, 8
  %v235 = vld [vmem:[%s234] sm:$0xf]
  %v236 = vld [vmem:[%s234 + $0x4] sm:$0xf]
  %v237 = vld [vmem:[%s234 + $0x8] sm:$0xf]
  %v238 = vld [vmem:[%s234 + $0xc] sm:$0xf]
  %v239 = vld [vmem:[%s234 + $0x10] sm:$0xf]
  %v240 = vld [vmem:[%s234 + $0x14] sm:$0xf]
  %v241 = vld [vmem:[%s234 + $0x18] sm:$0xf]
  %v242 = vld [vmem:[%s234 + $0x1c] sm:$0xf]
  %v243 = vld [vmem:[%s234 + $0x20] sm:$0xf]
  %v244 = vld [vmem:[%s234 + $0x24] sm:$0xf]
  %v245 = vld [vmem:[%s234 + $0x28] sm:$0xf]
  %v246 = vld [vmem:[%s234 + $0x2c] sm:$0xf]
  %v247 = vld [vmem:[%s234 + $0x30] sm:$0xf]
  %v248 = vld [vmem:[%s234 + $0x34] sm:$0xf]
  %v249 = vld [vmem:[%s234 + $0x38] sm:$0xf]
  %v250 = vld [vmem:[%s234 + $0x3c] sm:$0xf]
  %s251 = scalar_lea.vmem %s1, 20
  %v252 = vld [vmem:[%s251] sm:$0xf]
  %v253 = vld [vmem:[%s251 + $0x4] sm:$0xf]
  %v254 = vld [vmem:[%s251 + $0x8] sm:$0xf]
  %v255 = vld [vmem:[%s251 + $0xc] sm:$0xf]
  %v256 = vld [vmem:[%s251 + $0x10] sm:$0xf]
  %v273 = vunpack.c.l.b16 %v235
  %v274 = vunpack.c.l.b16 %v236
  %v275 = vunpack.c.l.b16 %v237
  %v276 = vunpack.c.l.b16 %v238
  %v277 = vunpack.c.l.b16 %v239
  %v278 = vunpack.c.l.b16 %v240
  %v279 = vunpack.c.l.b16 %v241
  %v280 = vunpack.c.l.b16 %v242
  %v281 = vunpack.c.l.b16 %v243
  %v282 = vunpack.c.l.b16 %v244
  %v283 = vunpack.c.l.b16 %v245
  %v284 = vunpack.c.l.b16 %v246
  %v285 = vunpack.c.l.b16 %v247
  %v286 = vunpack.c.l.b16 %v248
  %v287 = vunpack.c.l.b16 %v249
  %v288 = vunpack.c.l.b16 %v250
  %v289 = vpack.c.b16 %v274, %v273
  %v290 = vpack.c.b16 %v276, %v275
  %v291 = vpack.c.b16 %v278, %v277
  %v292 = vpack.c.b16 %v280, %v279
  %v293 = vpack.c.b16 %v282, %v281
  %v294 = vpack.c.b16 %v284, %v283
  %v295 = vpack.c.b16 %v286, %v285
  %v296 = vpack.c.b16 %v288, %v287
  %v302 = vunpack.c.l.b16 %v252
  %v303 = vunpack.c.l.b16 %v253
  %v304 = vunpack.c.l.b16 %v254
  %v305 = vunpack.c.l.b16 %v255
  %v306 = vunpack.c.l.b16 %v256
  %v307 = vpack.c.b16 %v303, %v302
  %v308 = vpack.c.b16 %v305, %v304
  %v309 = vpack.c.b16 %v306, %v306
  %v313 = vsel %vm91, %v289, 0
  %v316 = vsel %vm91, %v290, 0
  %v319 = vsel %vm91, %v291, 0
  %v322 = vsel %vm91, %v292, 0
  %v325 = vsel %vm91, %v293, 0
  %v328 = vsel %vm91, %v294, 0
  %v331 = vsel %vm91, %v295, 0
  %v334 = vsel %vm91, %v296, 0
  %v337 = vsel %vm116, %v309, 0
  %339 = vmatprep.subr.bf16.mxu0 0
  %340 = vmatpush1.bf16.msra.mxu0 %v307
  %341 = vmatprep.subr.bf16.mxu0 0
  %342 = vmatpush1.bf16.msra.mxu0 %v308
  %343 = vmatprep.subr.bf16.mxu0 0
  %344 = vmatpush1.bf16.msra.mxu0 %v337
  %345 = vmatprep.subr.bf16.mxu0 0
  %346 = vmatpush1.bf16.msra.mxu0 0
  %347 = vmatprep.subr.bf16.mxu0 0
  %348 = vmatpush1.bf16.msra.mxu0 0
  %349 = vmatprep.subr.bf16.mxu0 0
  %350 = vmatpush1.bf16.msra.mxu0 0
  %351 = vmatprep.subr.bf16.mxu0 0
  %352 = vmatpush1.bf16.msra.mxu0 0
  %353 = vmatprep.subr.bf16.mxu0 0
  %354 = vmatpush1.bf16.msra.mxu0 0
  %355 = vmatprep.subr.bf16.mxu0 0
  %356 = vmatpush1.bf16.msra.mxu0 0
  %357 = vmatprep.subr.bf16.mxu0 0
  %358 = vmatpush1.bf16.msra.mxu0 0
  %359 = vmatprep.subr.bf16.mxu0 0
  %360 = vmatpush1.bf16.msra.mxu0 0
  %361 = vmatprep.subr.bf16.mxu0 0
  %362 = vmatpush1.bf16.msra.mxu0 0
  %363 = vmatprep.subr.bf16.mxu0 0
  %364 = vmatpush1.bf16.msra.mxu0 0
  %365 = vmatprep.subr.bf16.mxu0 0
  %366 = vmatpush1.bf16.msra.mxu0 0
  %367 = vmatprep.subr.bf16.mxu0 0
  %368 = vmatpush1.bf16.msra.mxu0 0
  %369 = vmatprep.subr.bf16.mxu0 0
  %370 = vmatpush1.bf16.msra.mxu0 0
  %371 = vmatprep.mubr.bf16.mxu0 0
  %372 = vmatmul.mubr.bf16.gmra.mrb[0].mxu0 %v313
  %v373 = vpop.f32.mrb[0].mxu0
  %v374 = vadd.f32 0.0, %v373
  %v375 = vpop.f32.mrb[0].mxu0
  %v376 = vpop.f32.mrb[0].mxu0
  %v377 = vadd.f32 0.0, %v376
  %v378 = vpop.f32.mrb[0].mxu0
  %379 = vmatprep.mubr.bf16.mxu0 0
  %380 = vmatmul.mubr.bf16.gmra.mrb[0].mxu0 %v316
  %v381 = vpop.f32.mrb[0].mxu0
  %v382 = vadd.f32 0.0, %v381
  %v383 = vpop.f32.mrb[0].mxu0
  %v384 = vpop.f32.mrb[0].mxu0
  %v385 = vadd.f32 0.0, %v384
  %v386 = vpop.f32.mrb[0].mxu0
  %387 = vmatprep.mubr.bf16.mxu0 0
  %388 = vmatmul.mubr.bf16.gmra.mrb[0].mxu0 %v319
  %v389 = vpop.f32.mrb[0].mxu0
  %v390 = vadd.f32 0.0, %v389
  %v391 = vpop.f32.mrb[0].mxu0
  %v392 = vpop.f32.mrb[0].mxu0
  %v393 = vadd.f32 0.0, %v392
  %v394 = vpop.f32.mrb[0].mxu0
  %395 = vmatprep.mubr.bf16.mxu0 0
  %396 = vmatmul.mubr.bf16.gmra.mrb[0].mxu0 %v322
  %v397 = vpop.f32.mrb[0].mxu0
  %v398 = vadd.f32 0.0, %v397
  %v399 = vpop.f32.mrb[0].mxu0
  %v400 = vpop.f32.mrb[0].mxu0
  %v401 = vadd.f32 0.0, %v400
  %v402 = vpop.f32.mrb[0].mxu0
  %403 = vmatprep.mubr.bf16.mxu0 0
  %404 = vmatmul.mubr.bf16.gmra.mrb[0].mxu0 %v325
  %v405 = vpop.f32.mrb[0].mxu0
  %v406 = vadd.f32 0.0, %v405
  %v407 = vpop.f32.mrb[0].mxu0
  %v408 = vpop.f32.mrb[0].mxu0
  %v409 = vadd.f32 0.0, %v408
  %v410 = vpop.f32.mrb[0].mxu0
  %411 = vmatprep.mubr.bf16.mxu0 0
  %412 = vmatmul.mubr.bf16.gmra.mrb[0].mxu0 %v328
  %v413 = vpop.f32.mrb[0].mxu0
  %v414 = vadd.f32 0.0, %v413
  %v415 = vpop.f32.mrb[0].mxu0
  %v416 = vpop.f32.mrb[0].mxu0
  %v417 = vadd.f32 0.0, %v416
  %v418 = vpop.f32.mrb[0].mxu0
  %419 = vmatprep.mubr.bf16.mxu0 0
  %420 = vmatmul.mubr.bf16.gmra.mrb[0].mxu0 %v331
  %v421 = vpop.f32.mrb[0].mxu0
  %v422 = vadd.f32 0.0, %v421
  %v423 = vpop.f32.mrb[0].mxu0
  %v424 = vpop.f32.mrb[0].mxu0
  %v425 = vadd.f32 0.0, %v424
  %v426 = vpop.f32.mrb[0].mxu0
  %427 = vmatprep.mubr.bf16.mxu0 0
  %428 = vmatmul.mubr.bf16.gmra.mrb[0].mxu0 %v334
  %v429 = vpop.f32.mrb[0].mxu0
  %v430 = vadd.f32 0.0, %v429
  %v431 = vpop.f32.mrb[0].mxu0
  %v432 = vpop.f32.mrb[0].mxu0
  %v433 = vadd.f32 0.0, %v432
  %v434 = vpop.f32.mrb[0].mxu0
  %435 = vdwg.mxu0
  %v436 = vld [vmem:[#allocation2] sm:$0xff]
  %v437 = vld [vmem:[#allocation2 + $0x8] sm:$0xff]
  %v438 = vld [vmem:[#allocation2 + $0x10] sm:$0xff]
  %v439 = vld [vmem:[#allocation2 + $0x18] sm:$0xff]
  %v440 = vld [vmem:[#allocation2 + $0x20] sm:$0xff]
  %v441 = vld [vmem:[#allocation2 + $0x28] sm:$0xff]
  %v442 = vld [vmem:[#allocation2 + $0x30] sm:$0xff]
  %v443 = vld [vmem:[#allocation2 + $0x38] sm:$0xff]
  %v444 = vld [vmem:[#allocation2 + $0x40] sm:$0xff]
  %v445 = vld [vmem:[#allocation2 + $0x48] sm:$0xff]
  %v446 = vld [vmem:[#allocation2 + $0x50] sm:$0xff]
  %v447 = vld [vmem:[#allocation2 + $0x58] sm:$0xff]
  %v448 = vld [vmem:[#allocation2 + $0x60] sm:$0xff]
  %v449 = vld [vmem:[#allocation2 + $0x68] sm:$0xff]
  %v450 = vld [vmem:[#allocation2 + $0x70] sm:$0xff]
  %v451 = vld [vmem:[#allocation2 + $0x78] sm:$0xff]
  %v452 = vadd.f32 %v436, %v374
  %v453 = vadd.f32 %v437, %v377
  %v454 = vadd.f32 %v438, %v382
  %v455 = vadd.f32 %v439, %v385
  %v456 = vadd.f32 %v440, %v390
  %v457 = vadd.f32 %v441, %v393
  %v458 = vadd.f32 %v442, %v398
  %v459 = vadd.f32 %v443, %v401
  %v460 = vadd.f32 %v444, %v406
  %v461 = vadd.f32 %v445, %v409
  %v462 = vadd.f32 %v446, %v414
  %v463 = vadd.f32 %v447, %v417
  %v464 = vadd.f32 %v448, %v422
  %v465 = vadd.f32 %v449, %v425
  %v466 = vadd.f32 %v450, %v430
  %v467 = vadd.f32 %v451, %v433
  %468 = vst.msk [vmem:[#allocation2] sm:$0xff] %vm217, %v452
  %469 = vst.msk [vmem:[#allocation2 + $0x8] sm:$0xff] %vm217, %v453
  %470 = vst.msk [vmem:[#allocation2 + $0x10] sm:$0xff] %vm217, %v454
  %471 = vst.msk [vmem:[#allocation2 + $0x18] sm:$0xff] %vm217, %v455
  %472 = vst.msk [vmem:[#allocation2 + $0x20] sm:$0xff] %vm217, %v456
  %473 = vst.msk [vmem:[#allocation2 + $0x28] sm:$0xff] %vm217, %v457
  %474 = vst.msk [vmem:[#allocation2 + $0x30] sm:$0xff] %vm217, %v458
  %475 = vst.msk [vmem:[#allocation2 + $0x38] sm:$0xff] %vm217, %v459
  %476 = vst.msk [vmem:[#allocation2 + $0x40] sm:$0xff] %vm217, %v460
  %477 = vst.msk [vmem:[#allocation2 + $0x48] sm:$0xff] %vm217, %v461
  %478 = vst.msk [vmem:[#allocation2 + $0x50] sm:$0xff] %vm217, %v462
  %479 = vst.msk [vmem:[#allocation2 + $0x58] sm:$0xff] %vm217, %v463
  %480 = vst.msk [vmem:[#allocation2 + $0x60] sm:$0xff] %vm217, %v464
  %481 = vst.msk [vmem:[#allocation2 + $0x68] sm:$0xff] %vm217, %v465
  %482 = vst.msk [vmem:[#allocation2 + $0x70] sm:$0xff] %vm217, %v466
  %483 = vst.msk [vmem:[#allocation2 + $0x78] sm:$0xff] %vm217, %v467
  %s484 = scalar_lea.vmem %s0, 16
  %v485 = vld [vmem:[%s484] sm:$0xf]
  %v486 = vld [vmem:[%s484 + $0x4] sm:$0xf]
  %v487 = vld [vmem:[%s484 + $0x8] sm:$0xf]
  %v488 = vld [vmem:[%s484 + $0xc] sm:$0xf]
  %v489 = vld [vmem:[%s484 + $0x10] sm:$0xf]
  %v490 = vld [vmem:[%s484 + $0x14] sm:$0xf]
  %v491 = vld [vmem:[%s484 + $0x18] sm:$0xf]
  %v492 = vld [vmem:[%s484 + $0x1c] sm:$0xf]
  %v493 = vld [vmem:[%s484 + $0x20] sm:$0xf]
  %v494 = vld [vmem:[%s484 + $0x24] sm:$0xf]
  %v495 = vld [vmem:[%s484 + $0x28] sm:$0xf]
  %v496 = vld [vmem:[%s484 + $0x2c] sm:$0xf]
  %v497 = vld [vmem:[%s484 + $0x30] sm:$0xf]
  %v498 = vld [vmem:[%s484 + $0x34] sm:$0xf]
  %v499 = vld [vmem:[%s484 + $0x38] sm:$0xf]
  %v500 = vld [vmem:[%s484 + $0x3c] sm:$0xf]
  %s501 = scalar_lea.vmem %s1, 40
  %v502 = vld [vmem:[%s501] sm:$0xf]
  %v503 = vld [vmem:[%s501 + $0x4] sm:$0xf]
  %v504 = vld [vmem:[%s501 + $0x8] sm:$0xf]
  %v505 = vld [vmem:[%s501 + $0xc] sm:$0xf]
  %v506 = vld [vmem:[%s501 + $0x10] sm:$0xf]
  %v523 = vunpack.c.l.b16 %v485
  %v524 = vunpack.c.l.b16 %v486
  %v525 = vunpack.c.l.b16 %v487
  %v526 = vunpack.c.l.b16 %v488
  %v527 = vunpack.c.l.b16 %v489
  %v528 = vunpack.c.l.b16 %v490
  %v529 = vunpack.c.l.b16 %v491
  %v530 = vunpack.c.l.b16 %v492
  %v531 = vunpack.c.l.b16 %v493
  %v532 = vunpack.c.l.b16 %v494
  %v533 = vunpack.c.l.b16 %v495
  %v534 = vunpack.c.l.b16 %v496
  %v535 = vunpack.c.l.b16 %v497
  %v536 = vunpack.c.l.b16 %v498
  %v537 = vunpack.c.l.b16 %v499
  %v538 = vunpack.c.l.b16 %v500
  %v539 = vpack.c.b16 %v524, %v523
  %v540 = vpack.c.b16 %v526, %v525
  %v541 = vpack.c.b16 %v528, %v527
  %v542 = vpack.c.b16 %v530, %v529
  %v543 = vpack.c.b16 %v532, %v531
  %v544 = vpack.c.b16 %v534, %v533
  %v545 = vpack.c.b16 %v536, %v535
  %v546 = vpack.c.b16 %v538, %v537
  %v552 = vunpack.c.l.b16 %v502
  %v553 = vunpack.c.l.b16 %v503
  %v554 = vunpack.c.l.b16 %v504
  %v555 = vunpack.c.l.b16 %v505
  %v556 = vunpack.c.l.b16 %v506
  %v557 = vpack.c.b16 %v553, %v552
  %v558 = vpack.c.b16 %v555, %v554
  %v559 = vpack.c.b16 %v556, %v556
  %v563 = vsel %vm91, %v539, 0
  %v566 = vsel %vm91, %v540, 0
  %v569 = vsel %vm91, %v541, 0
  %v572 = vsel %vm91, %v542, 0
  %v575 = vsel %vm91, %v543, 0
  %v578 = vsel %vm91, %v544, 0
  %v581 = vsel %vm91, %v545, 0
  %v584 = vsel %vm91, %v546, 0
  %v587 = vsel %vm116, %v559, 0
  %589 = vmatprep.subr.bf16.mxu0 0
  %590 = vmatpush1.bf16.msra.mxu0 %v557
  %591 = vmatprep.subr.bf16.mxu0 0
  %592 = vmatpush1.bf16.msra.mxu0 %v558
  %593 = vmatprep.subr.bf16.mxu0 0
  %594 = vmatpush1.bf16.msra.mxu0 %v587
  %595 = vmatprep.subr.bf16.mxu0 0
  %596 = vmatpush1.bf16.msra.mxu0 0
  %597 = vmatprep.subr.bf16.mxu0 0
  %598 = vmatpush1.bf16.msra.mxu0 0
  %599 = vmatprep.subr.bf16.mxu0 0
  %600 = vmatpush1.bf16.msra.mxu0 0
  %601 = vmatprep.subr.bf16.mxu0 0
  %602 = vmatpush1.bf16.msra.mxu0 0
  %603 = vmatprep.subr.bf16.mxu0 0
  %604 = vmatpush1.bf16.msra.mxu0 0
  %605 = vmatprep.subr.bf16.mxu0 0
  %606 = vmatpush1.bf16.msra.mxu0 0
  %607 = vmatprep.subr.bf16.mxu0 0
  %608 = vmatpush1.bf16.msra.mxu0 0
  %609 = vmatprep.subr.bf16.mxu0 0
  %610 = vmatpush1.bf16.msra.mxu0 0
  %611 = vmatprep.subr.bf16.mxu0 0
  %612 = vmatpush1.bf16.msra.mxu0 0
  %613 = vmatprep.subr.bf16.mxu0 0
  %614 = vmatpush1.bf16.msra.mxu0 0
  %615 = vmatprep.subr.bf16.mxu0 0
  %616 = vmatpush1.bf16.msra.mxu0 0
  %617 = vmatprep.subr.bf16.mxu0 0
  %618 = vmatpush1.bf16.msra.mxu0 0
  %619 = vmatprep.subr.bf16.mxu0 0
  %620 = vmatpush1.bf16.msra.mxu0 0
  %621 = vmatprep.mubr.bf16.mxu0 0
  %622 = vmatmul.mubr.bf16.gmra.mrb[0].mxu0 %v563
  %v623 = vpop.f32.mrb[0].mxu0
  %v624 = vadd.f32 0.0, %v623
  %v625 = vpop.f32.mrb[0].mxu0
  %v626 = vpop.f32.mrb[0].mxu0
  %v627 = vadd.f32 0.0, %v626
  %v628 = vpop.f32.mrb[0].mxu0
  %629 = vmatprep.mubr.bf16.mxu0 0
  %630 = vmatmul.mubr.bf16.gmra.mrb[0].mxu0 %v566
  %v631 = vpop.f32.mrb[0].mxu0
  %v632 = vadd.f32 0.0, %v631
  %v633 = vpop.f32.mrb[0].mxu0
  %v634 = vpop.f32.mrb[0].mxu0
  %v635 = vadd.f32 0.0, %v634
  %v636 = vpop.f32.mrb[0].mxu0
  %637 = vmatprep.mubr.bf16.mxu0 0
  %638 = vmatmul.mubr.bf16.gmra.mrb[0].mxu0 %v569
  %v639 = vpop.f32.mrb[0].mxu0
  %v640 = vadd.f32 0.0, %v639
  %v641 = vpop.f32.mrb[0].mxu0
  %v642 = vpop.f32.mrb[0].mxu0
  %v643 = vadd.f32 0.0, %v642
  %v644 = vpop.f32.mrb[0].mxu0
  %645 = vmatprep.mubr.bf16.mxu0 0
  %646 = vmatmul.mubr.bf16.gmra.mrb[0].mxu0 %v572
  %v647 = vpop.f32.mrb[0].mxu0
  %v648 = vadd.f32 0.0, %v647
  %v649 = vpop.f32.mrb[0].mxu0
  %v650 = vpop.f32.mrb[0].mxu0
  %v651 = vadd.f32 0.0, %v650
  %v652 = vpop.f32.mrb[0].mxu0
  %653 = vmatprep.mubr.bf16.mxu0 0
  %654 = vmatmul.mubr.bf16.gmra.mrb[0].mxu0 %v575
  %v655 = vpop.f32.mrb[0].mxu0
  %v656 = vadd.f32 0.0, %v655
  %v657 = vpop.f32.mrb[0].mxu0
  %v658 = vpop.f32.mrb[0].mxu0
  %v659 = vadd.f32 0.0, %v658
  %v660 = vpop.f32.mrb[0].mxu0
  %661 = vmatprep.mubr.bf16.mxu0 0
  %662 = vmatmul.mubr.bf16.gmra.mrb[0].mxu0 %v578
  %v663 = vpop.f32.mrb[0].mxu0
  %v664 = vadd.f32 0.0, %v663
  %v665 = vpop.f32.mrb[0].mxu0
  %v666 = vpop.f32.mrb[0].mxu0
  %v667 = vadd.f32 0.0, %v666
  %v668 = vpop.f32.mrb[0].mxu0
  %669 = vmatprep.mubr.bf16.mxu0 0
  %670 = vmatmul.mubr.bf16.gmra.mrb[0].mxu0 %v581
  %v671 = vpop.f32.mrb[0].mxu0
  %v672 = vadd.f32 0.0, %v671
  %v673 = vpop.f32.mrb[0].mxu0
  %v674 = vpop.f32.mrb[0].mxu0
  %v675 = vadd.f32 0.0, %v674
  %v676 = vpop.f32.mrb[0].mxu0
  %677 = vmatprep.mubr.bf16.mxu0 0
  %678 = vmatmul.mubr.bf16.gmra.mrb[0].mxu0 %v584
  %v679 = vpop.f32.mrb[0].mxu0
  %v680 = vadd.f32 0.0, %v679
  %v681 = vpop.f32.mrb[0].mxu0
  %v682 = vpop.f32.mrb[0].mxu0
  %v683 = vadd.f32 0.0, %v682
  %v684 = vpop.f32.mrb[0].mxu0
  %685 = vdwg.mxu0
  %v686 = vld [vmem:[#allocation2] sm:$0xff]
  %v687 = vld [vmem:[#allocation2 + $0x8] sm:$0xff]
  %v688 = vld [vmem:[#allocation2 + $0x10] sm:$0xff]
  %v689 = vld [vmem:[#allocation2 + $0x18] sm:$0xff]
  %v690 = vld [vmem:[#allocation2 + $0x20] sm:$0xff]
  %v691 = vld [vmem:[#allocation2 + $0x28] sm:$0xff]
  %v692 = vld [vmem:[#allocation2 + $0x30] sm:$0xff]
  %v693 = vld [vmem:[#allocation2 + $0x38] sm:$0xff]
  %v694 = vld [vmem:[#allocation2 + $0x40] sm:$0xff]
  %v695 = vld [vmem:[#allocation2 + $0x48] sm:$0xff]
  %v696 = vld [vmem:[#allocation2 + $0x50] sm:$0xff]
  %v697 = vld [vmem:[#allocation2 + $0x58] sm:$0xff]
  %v698 = vld [vmem:[#allocation2 + $0x60] sm:$0xff]
  %v699 = vld [vmem:[#allocation2 + $0x68] sm:$0xff]
  %v700 = vld [vmem:[#allocation2 + $0x70] sm:$0xff]
  %v701 = vld [vmem:[#allocation2 + $0x78] sm:$0xff]
  %v702 = vadd.f32 %v686, %v624
  %v703 = vadd.f32 %v687, %v627
  %v704 = vadd.f32 %v688, %v632
  %v705 = vadd.f32 %v689, %v635
  %v706 = vadd.f32 %v690, %v640
  %v707 = vadd.f32 %v691, %v643
  %v708 = vadd.f32 %v692, %v648
  %v709 = vadd.f32 %v693, %v651
  %v710 = vadd.f32 %v694, %v656
  %v711 = vadd.f32 %v695, %v659
  %v712 = vadd.f32 %v696, %v664
  %v713 = vadd.f32 %v697, %v667
  %v714 = vadd.f32 %v698, %v672
  %v715 = vadd.f32 %v699, %v675
  %v716 = vadd.f32 %v700, %v680
  %v717 = vadd.f32 %v701, %v683
  %718 = vst.msk [vmem:[#allocation2] sm:$0xff] %vm217, %v702
  %719 = vst.msk [vmem:[#allocation2 + $0x8] sm:$0xff] %vm217, %v703
  %720 = vst.msk [vmem:[#allocation2 + $0x10] sm:$0xff] %vm217, %v704
  %721 = vst.msk [vmem:[#allocation2 + $0x18] sm:$0xff] %vm217, %v705
  %722 = vst.msk [vmem:[#allocation2 + $0x20] sm:$0xff] %vm217, %v706
  %723 = vst.msk [vmem:[#allocation2 + $0x28] sm:$0xff] %vm217, %v707
  %724 = vst.msk [vmem:[#allocation2 + $0x30] sm:$0xff] %vm217, %v708
  %725 = vst.msk [vmem:[#allocation2 + $0x38] sm:$0xff] %vm217, %v709
  %726 = vst.msk [vmem:[#allocation2 + $0x40] sm:$0xff] %vm217, %v710
  %727 = vst.msk [vmem:[#allocation2 + $0x48] sm:$0xff] %vm217, %v711
  %728 = vst.msk [vmem:[#allocation2 + $0x50] sm:$0xff] %vm217, %v712
  %729 = vst.msk [vmem:[#allocation2 + $0x58] sm:$0xff] %vm217, %v713
  %730 = vst.msk [vmem:[#allocation2 + $0x60] sm:$0xff] %vm217, %v714
  %731 = vst.msk [vmem:[#allocation2 + $0x68] sm:$0xff] %vm217, %v715
  %732 = vst.msk [vmem:[#allocation2 + $0x70] sm:$0xff] %vm217, %v716
  %733 = vst.msk [vmem:[#allocation2 + $0x78] sm:$0xff] %vm217, %v717
  %v734 = vld [vmem:[#allocation2] sm:$0xff]
  %v735 = vld [vmem:[#allocation2 + $0x8] sm:$0xff]
  %v736 = vld [vmem:[#allocation2 + $0x10] sm:$0xff]
  %v737 = vld [vmem:[#allocation2 + $0x18] sm:$0xff]
  %v738 = vld [vmem:[#allocation2 + $0x20] sm:$0xff]
  %v739 = vld [vmem:[#allocation2 + $0x28] sm:$0xff]
  %v740 = vld [vmem:[#allocation2 + $0x30] sm:$0xff]
  %v741 = vld [vmem:[#allocation2 + $0x38] sm:$0xff]
  %v742 = vld [vmem:[#allocation2 + $0x40] sm:$0xff]
  %v743 = vld [vmem:[#allocation2 + $0x48] sm:$0xff]
  %v744 = vld [vmem:[#allocation2 + $0x50] sm:$0xff]
  %v745 = vld [vmem:[#allocation2 + $0x58] sm:$0xff]
  %v746 = vld [vmem:[#allocation2 + $0x60] sm:$0xff]
  %v747 = vld [vmem:[#allocation2 + $0x68] sm:$0xff]
  %v748 = vld [vmem:[#allocation2 + $0x70] sm:$0xff]
  %v749 = vld [vmem:[#allocation2 + $0x78] sm:$0xff]
  %v750 = vld [vmem:[%s2] sm:$0x1]
  %v752 = vlaneseq
  %v753 = vshrl.u32 %v752, 7
  %v754 = vsub.s32 0, %v753
  %v755 = vrot.slane %v750, %v754
  %v757 = vadd.f32 %v734, %v755
  %v758 = vadd.f32 %v735, %v755
  %v759 = vadd.f32 %v736, %v755
  %v760 = vadd.f32 %v737, %v755
  %v761 = vadd.f32 %v738, %v755
  %v762 = vadd.f32 %v739, %v755
  %v763 = vadd.f32 %v740, %v755
  %v764 = vadd.f32 %v741, %v755
  %v765 = vadd.f32 %v742, %v755
  %v766 = vadd.f32 %v743, %v755
  %v767 = vadd.f32 %v744, %v755
  %v768 = vadd.f32 %v745, %v755
  %v769 = vadd.f32 %v746, %v755
  %v770 = vadd.f32 %v747, %v755
  %v771 = vadd.f32 %v748, %v755
  %v772 = vadd.f32 %v749, %v755
  %v773 = vmax.f32 %v757, 0.0
  %v774 = vmax.f32 %v758, 0.0
  %v775 = vmax.f32 %v759, 0.0
  %v776 = vmax.f32 %v760, 0.0
  %v777 = vmax.f32 %v761, 0.0
  %v778 = vmax.f32 %v762, 0.0
  %v779 = vmax.f32 %v763, 0.0
  %v780 = vmax.f32 %v764, 0.0
  %v781 = vmax.f32 %v765, 0.0
  %v782 = vmax.f32 %v766, 0.0
  %v783 = vmax.f32 %v767, 0.0
  %v784 = vmax.f32 %v768, 0.0
  %v785 = vmax.f32 %v769, 0.0
  %v786 = vmax.f32 %v770, 0.0
  %v787 = vmax.f32 %v771, 0.0
  %v788 = vmax.f32 %v772, 0.0
  %789 = vst.msk [vmem:[%s3] sm:$0xff] %vm217, %v773
  %790 = vst.msk [vmem:[%s3 + $0x8] sm:$0xff] %vm217, %v774
  %791 = vst.msk [vmem:[%s3 + $0x10] sm:$0xff] %vm217, %v775
  %792 = vst.msk [vmem:[%s3 + $0x18] sm:$0xff] %vm217, %v776
  %793 = vst.msk [vmem:[%s3 + $0x20] sm:$0xff] %vm217, %v777
  %794 = vst.msk [vmem:[%s3 + $0x28] sm:$0xff] %vm217, %v778
  %795 = vst.msk [vmem:[%s3 + $0x30] sm:$0xff] %vm217, %v779
  %796 = vst.msk [vmem:[%s3 + $0x38] sm:$0xff] %vm217, %v780
  %797 = vst.msk [vmem:[%s3 + $0x40] sm:$0xff] %vm217, %v781
  %798 = vst.msk [vmem:[%s3 + $0x48] sm:$0xff] %vm217, %v782
  %799 = vst.msk [vmem:[%s3 + $0x50] sm:$0xff] %vm217, %v783
  %800 = vst.msk [vmem:[%s3 + $0x58] sm:$0xff] %vm217, %v784
  %801 = vst.msk [vmem:[%s3 + $0x60] sm:$0xff] %vm217, %v785
  %802 = vst.msk [vmem:[%s3 + $0x68] sm:$0xff] %vm217, %v786
  %803 = vst.msk [vmem:[%s3 + $0x70] sm:$0xff] %vm217, %v787
  %804 = vst.msk [vmem:[%s3 + $0x78] sm:$0xff] %vm217, %v788
  // Predicated region
  $region14: #{conv_3x3x1_forward.1} parent=0 // pred_check
    _
  $region15: #{conv_3x3x1_forward.1} parent=0 // pred_check_branch
    %806 = sbr.rel (0) target = $region17
  $region16: #{conv_3x3x1_forward.1} parent=0 // pred_region
    _
  $region17: #{conv_3x3x1_forward.1} parent=0 // pred_fallthru
    _
  // Predicated region
  $region18: #{conv_3x3x1_forward.1} parent=0 // pred_check
    _
  $region19: #{conv_3x3x1_forward.1} parent=0 // pred_check_branch
    %808 = sbr.rel (0) target = $region21
  $region20: #{conv_3x3x1_forward.1} parent=0 // pred_region
    _
  $region21: #{conv_3x3x1_forward.1} parent=0 // pred_fallthru
    _

</llo_original>
